<compile_context>
chip_gen: v7x
topology: tpu7x:2x2x1
jax: 0.10.0
libtpu: 0.0.40
codegen_flags: <defaults>
</compile_context>

<pallas_src>
import functools

import jax
import jax.numpy as jnp
from jax.experimental import pallas as pl
from jax.experimental.pallas import tpu as pltpu


def mha_kernel(x_ref, wqkv_ref, bqkv_ref, wo_ref, bo_ref, o_ref, *,
               heads_per_block, att_size, scale):
    hb = pl.program_id(1)
    d = att_size
    hd = heads_per_block * d

    @pl.when(hb == 0)
    def _init():
        # Fold the output-projection bias into the init (no separate finalize pass).
        o_ref[...] = jnp.broadcast_to(bo_ref[...], o_ref.shape).astype(o_ref.dtype)

    x_bf = x_ref[...]                                                    # (S, H) bf16

    # Fused Q|K|V projection for all heads of this block: one wide bf16 MXU matmul with
    # f32 accumulation; the weight block is resident in VMEM (indexed, not re-streamed).
    qkv = jnp.dot(x_bf, wqkv_ref[hb],
                  preferred_element_type=jnp.float32) + bqkv_ref[hb]     # (S, 3*hd) f32
    qkv_bf = qkv.astype(jnp.bfloat16)

    head_outs = []
    for hh in range(heads_per_block):                                    # static, small
        q = qkv_bf[:, hh * d:(hh + 1) * d]
        k = qkv_bf[:, hd + hh * d:hd + (hh + 1) * d]
        v = qkv_bf[:, 2 * hd + hh * d:2 * hd + (hh + 1) * d]

        # scores = (q @ k.T) * scale as an NT dot_general (no explicit transpose);
        # the scale is folded in after the f32 accumulation (numerically identical).
        s = jax.lax.dot_general(q, k, (((1,), (1,)), ((), ())),
                                preferred_element_type=jnp.float32) * scale  # (S, S) f32

        # softmax in f32 with an exact divide (rows sum to 1); att_dropout is identity.
        m = jnp.max(s, axis=-1, keepdims=True)
        p = jnp.exp(s - m)
        attn = p / jnp.sum(p, axis=-1, keepdims=True)

        head_outs.append(jnp.dot(attn.astype(jnp.bfloat16), v,
                                 preferred_element_type=jnp.float32))    # (S, d) f32

    # Concatenate this block's heads along lanes and apply its slice of the output
    # projection, accumulating straight into the resident f32 output block.
    blk = jnp.concatenate(head_outs, axis=-1).astype(jnp.bfloat16)       # (S, hd)
    o_ref[...] += jnp.dot(blk, wo_ref[hb], preferred_element_type=jnp.float32)


def _pick_heads_per_block(num_heads, att_size):
    """Smallest divisor of num_heads whose fused QKV width (3*d*hpb) reaches the MXU
    width (256 lanes); falls back to all heads for tiny shapes (one fat step)."""
    hpb = 1
    for cand in range(1, num_heads + 1):
        if num_heads % cand == 0:
            hpb = cand
            if 3 * att_size * cand >= 256:
                break
    return hpb


def _prepare_params(params, num_heads, heads_per_block):
    """Host-side (trace-time) repacking of PyTorch-layout Linear params.

    torch nn.Linear stores weight as (out_features, in_features) and computes x @ W.T + b.
    Per head-block hb (hpb heads, hd = hpb*d):
      wqkv[hb] = [Wq.T[:, blk] | Wk.T[:, blk] | Wv.T[:, blk]]  -> (NHB, H, 3*hd) bf16
      wo[hb]   =  Wo.T[blk, :]                                 -> (NHB, hd, H)   bf16
    so the kernel never transposes and only does cheap static slices.
    """
    H = params["wq"].shape[1]
    d = H // num_heads
    hpb = heads_per_block
    nhb = num_heads // hpb
    hd = hpb * d

    def blk_w(w):    # (out=NH*d, in=H) -> (NHB, H, hd), ready for x @ W
        return jnp.transpose(w.T.reshape(H, nhb, hd), (1, 0, 2))

    def blk_b(b):    # (NH*d,) -> (NHB, hd)
        return b.reshape(nhb, hd)

    wqkv = jnp.concatenate([blk_w(params["wq"]), blk_w(params["wk"]),
                            blk_w(params["wv"])], axis=-1).astype(jnp.bfloat16)
    bqkv = jnp.concatenate([blk_b(params["bq"]), blk_b(params["bk"]),
                            blk_b(params["bv"])],
                           axis=-1).reshape(nhb, 1, 3 * hd).astype(jnp.float32)
    wo = params["wo"].T.reshape(nhb, hd, H).astype(jnp.bfloat16)
    bo = params["bo"].reshape(1, H).astype(jnp.float32)
    return wqkv, bqkv, wo, bo


def multi_head_attention(x, params, num_heads):
    """Self-attention forward of MultiHeadAttention (q = k = v = x)."""
    B, S, H = x.shape
    assert H % num_heads == 0
    d = H // num_heads
    scale = d ** (-0.5)

    hpb = _pick_heads_per_block(num_heads, d)
    nhb = num_heads // hpb
    hd = hpb * d

    wqkv, bqkv, wo, bo = _prepare_params(params, num_heads, hpb)
    x_bf = x.astype(jnp.bfloat16)            # cast once host-side (halves x DMA bytes)

    kern = functools.partial(mha_kernel, heads_per_block=hpb, att_size=d, scale=scale)

    # VMEM budget: resident weights + double-buffered x/out blocks + per-step temporaries.
    weight_bytes = wqkv.size * 2 + bqkv.size * 4 + wo.size * 2 + bo.size * 4
    block_bytes = 2 * (S * H * 2) + 2 * (S * H * 4)
    temp_bytes = 4 * (3 * S * hd + 2 * S * S + S * hd) * 4
    footprint = weight_bytes + block_bytes + temp_bytes
    try:
        vmem_cap = getattr(pltpu.get_tpu_info(), "vmem_capacity_bytes", 64 * 2 ** 20)
    except Exception:
        vmem_cap = 64 * 2 ** 20
    vmem_limit = int(min(vmem_cap * 3 // 4, max(8 * 2 ** 20, 2 * footprint)))

    return pl.pallas_call(
        kern,
        out_shape=jax.ShapeDtypeStruct((B, S, H), jnp.float32),
        grid=(B, nhb),
        in_specs=[
            pl.BlockSpec((None, S, H), lambda b, h: (b, 0, 0)),        # x: per-batch block
            # Full weight arrays with constant index_map: DMA'd once, resident in VMEM.
            pl.BlockSpec((nhb, H, 3 * hd), lambda b, h: (0, 0, 0)),    # fused QKV weights
            pl.BlockSpec((nhb, 1, 3 * hd), lambda b, h: (0, 0, 0)),    # fused QKV biases
            pl.BlockSpec((nhb, hd, H), lambda b, h: (0, 0, 0)),        # output-proj weights
            pl.BlockSpec((1, H), lambda b, h: (0, 0)),                 # output-proj bias
        ],
        out_specs=pl.BlockSpec((None, S, H), lambda b, h: (b, 0, 0)),  # resident over head axis
        compiler_params=pltpu.CompilerParams(
            dimension_semantics=("parallel", "arbitrary"),
            vmem_limit_bytes=vmem_limit),
    )(x_bf, wqkv, bqkv, wo, bo)


def init_params(key, hidden):
    """PyTorch nn.Linear layout: weight (out_features, in_features), bias (out_features,)."""
    ks = jax.random.split(key, 8)
    s = 0.02
    return {
        "wq": s * jax.random.normal(ks[0], (hidden, hidden), jnp.float32),
        "bq": 0.01 * jax.random.normal(ks[1], (hidden,), jnp.float32),
        "wk": s * jax.random.normal(ks[2], (hidden, hidden), jnp.float32),
        "bk": 0.01 * jax.random.normal(ks[3], (hidden,), jnp.float32),
        "wv": s * jax.random.normal(ks[4], (hidden, hidden), jnp.float32),
        "bv": 0.01 * jax.random.normal(ks[5], (hidden,), jnp.float32),
        "wo": s * jax.random.normal(ks[6], (hidden, hidden), jnp.float32),
        "bo": 0.01 * jax.random.normal(ks[7], (hidden,), jnp.float32),
    }


def mha_reference(x, params, num_heads):
    """Pure-JAX f32 port of the PyTorch forward (edge_attr=None, attn_mask=None)."""
    B, S, H = x.shape
    d = H // num_heads
    scale = d ** (-0.5)

    def lin(t, w, b):
        return jnp.einsum("bsh,oh->bso", t, w) + b

    q = lin(x, params["wq"], params["bq"]).reshape(B, S, num_heads, d).transpose(0, 2, 1, 3)
    k = lin(x, params["wk"], params["bk"]).reshape(B, S, num_heads, d).transpose(0, 2, 1, 3)
    v = lin(x, params["wv"], params["bv"]).reshape(B, S, num_heads, d).transpose(0, 2, 1, 3)
    scores = jnp.einsum("bhqd,bhkd->bhqk", q * scale, k)
    attn = jax.nn.softmax(scores, axis=-1)
    out = jnp.einsum("bhqk,bhkd->bhqd", attn, v)
    out = out.transpose(0, 2, 1, 3).reshape(B, S, H)
    return jnp.einsum("bsh,oh->bso", out, params["wo"]) + params["bo"]


if __name__ == "__main__":
    B, S, H, NH = 2, 8, 32, 4
    key = jax.random.PRNGKey(0)
    kx, kp = jax.random.split(key)
    x = jax.random.normal(kx, (B, S, H), jnp.float32)
    params = init_params(kp, H)

    out = multi_head_attention(x, params, NH)
    jax.block_until_ready(out)
    assert out.shape == (B, S, H)

    ref = mha_reference(x, params, NH)
    err = float(jnp.max(jnp.abs(out - ref)))
    assert err < 5e-3, f"max abs err vs f32 reference: {err}"
    print("KERNEL_OK")
</pallas_src>

<mosaic_0001>
module attributes {stable_mosaic.version = 11 : i64} {
  func.func @mha_kernel(%arg0: i32, %arg1: i32, %arg2: memref<1x8x32xbf16, #tpu.memory_space<vmem>>, %arg3: memref<1x32x96xbf16, #tpu.memory_space<vmem>>, %arg4: memref<1x1x96xf32, #tpu.memory_space<vmem>>, %arg5: memref<1x32x32xbf16, #tpu.memory_space<vmem>>, %arg6: memref<1x32xf32, #tpu.memory_space<vmem>>, %arg7: memref<1x8x32xf32, #tpu.memory_space<vmem>>) attributes {dimension_semantics = [#tpu.dimension_semantics<parallel>, #tpu.dimension_semantics<arbitrary>], iteration_bounds = array<i64: 2, 1>, scalar_prefetch = 0 : i64, scratch_operands = 0 : i64, tpu.core_type = #tpu.core_type<tc>, window_params = [{transform_indices = @transform_0, window_bounds = array<i64: 1, 8, 32>}, {pipeline_mode = #tpu.pipeline_mode<synchronous>, transform_indices = @transform_1, window_bounds = array<i64: 1, 32, 96>}, {pipeline_mode = #tpu.pipeline_mode<synchronous>, transform_indices = @transform_2, window_bounds = array<i64: 1, 1, 96>}, {pipeline_mode = #tpu.pipeline_mode<synchronous>, transform_indices = @transform_3, window_bounds = array<i64: 1, 32, 32>}, {pipeline_mode = #tpu.pipeline_mode<synchronous>, transform_indices = @transform_4, window_bounds = array<i64: 1, 32>}, {transform_indices = @transform_5, window_bounds = array<i64: 1, 8, 32>}]} {
    %c0_i32 = arith.constant 0 : i32
    %0 = arith.cmpi eq, %arg1, %c0_i32 : i32
    %1 = arith.extui %0 : i1 to i32
    %c0_i32_0 = arith.constant 0 : i32
    %2 = arith.cmpi ne, %1, %c0_i32_0 : i32
    scf.if %2 {
      %c0_36 = arith.constant 0 : index
      %c0_37 = arith.constant 0 : index
      %95 = vector.load %arg6[%c0_36, %c0_37] : memref<1x32xf32, #tpu.memory_space<vmem>>, vector<1x32xf32>
      %96 = vector.shape_cast %95 : vector<1x32xf32> to vector<1x32xf32>
      %97 = vector.broadcast %96 : vector<1x32xf32> to vector<8x32xf32>
      %c0_38 = arith.constant 0 : index
      %c0_39 = arith.constant 0 : index
      %c0_40 = arith.constant 0 : index
      %98 = vector.load %arg7[%c0_38, %c0_39, %c0_40] : memref<1x8x32xf32, #tpu.memory_space<vmem>>, vector<1x8x32xf32>
      %99 = vector.shape_cast %98 : vector<1x8x32xf32> to vector<8x32xf32>
      %100 = vector.shape_cast %97 : vector<8x32xf32> to vector<1x8x32xf32>
      tpu.vector_store %arg7[%c0_38, %c0_39, %c0_40], %100 {strides = array<i32>} : memref<1x8x32xf32, #tpu.memory_space<vmem>>, vector<1x8x32xf32>,
    } else {
    }
    %c0 = arith.constant 0 : index
    %c0_1 = arith.constant 0 : index
    %c0_2 = arith.constant 0 : index
    %3 = vector.load %arg2[%c0, %c0_1, %c0_2] : memref<1x8x32xbf16, #tpu.memory_space<vmem>>, vector<1x8x32xbf16>
    %4 = vector.shape_cast %3 : vector<1x8x32xbf16> to vector<8x32xbf16>
    %5 = arith.index_cast %arg1 : i32 to index
    %c0_3 = arith.constant 0 : index
    %c0_4 = arith.constant 0 : index
    %6 = vector.load %arg3[%5, %c0_3, %c0_4] : memref<1x32x96xbf16, #tpu.memory_space<vmem>>, vector<1x32x96xbf16>
    %7 = vector.shape_cast %6 : vector<1x32x96xbf16> to vector<32x96xbf16>
    %cst = arith.constant dense<0.000000e+00> : vector<8x96xf32>
    %8 = tpu.matmul %4, %7, %cst {dimension_numbers = #tpu.dot_dimension_numbers<[1], [0], [0], [1], [0, 0, 1, 1], [], []>} : vector<8x32xbf16>, vector<32x96xbf16>, vector<8x96xf32> -> vector<8x96xf32>
    %9 = arith.index_cast %arg1 : i32 to index
    %c0_5 = arith.constant 0 : index
    %c0_6 = arith.constant 0 : index
    %10 = vector.load %arg4[%9, %c0_5, %c0_6] : memref<1x1x96xf32, #tpu.memory_space<vmem>>, vector<1x1x96xf32>
    %11 = vector.shape_cast %10 : vector<1x1x96xf32> to vector<1x96xf32>
    %12 = vector.broadcast %11 : vector<1x96xf32> to vector<8x96xf32>
    %13 = arith.addf %8, %12 : vector<8x96xf32>
    %14 = arith.truncf %13 : vector<8x96xf32> to vector<8x96xbf16>
    %15 = vector.extract_strided_slice %14 {offsets = [0, 0], sizes = [8, 8], strides = [1, 1]} : vector<8x96xbf16> to vector<8x8xbf16>
    %16 = vector.extract_strided_slice %14 {offsets = [0, 32], sizes = [8, 8], strides = [1, 1]} : vector<8x96xbf16> to vector<8x8xbf16>
    %17 = vector.extract_strided_slice %14 {offsets = [0, 64], sizes = [8, 8], strides = [1, 1]} : vector<8x96xbf16> to vector<8x8xbf16>
    %cst_7 = arith.constant dense<0.000000e+00> : vector<8x8xf32>
    %18 = tpu.matmul %15, %16, %cst_7 {dimension_numbers = #tpu.dot_dimension_numbers<[1], [1], [0], [0], [0, 0, 1, 0], [], []>} : vector<8x8xbf16>, vector<8x8xbf16>, vector<8x8xf32> -> vector<8x8xf32>
    %cst_8 = arith.constant 0.353553385 : f32
    %19 = vector.broadcast %cst_8 : f32 to vector<8x8xf32>
    %20 = arith.mulf %18, %19 : vector<8x8xf32>
    %cst_9 = arith.constant dense<0xFF800000> : vector<8xf32>
    %21 = vector.multi_reduction <maximumf>, %20, %cst_9 [1] : vector<8x8xf32> to vector<8xf32>
    %22 = vector.shape_cast %21 : vector<8xf32> to vector<8x1xf32>
    %23 = vector.broadcast %22 : vector<8x1xf32> to vector<8x8xf32>
    %24 = arith.subf %20, %23 : vector<8x8xf32>
    %25 = math.exp %24 : vector<8x8xf32>
    %cst_10 = arith.constant dense<0.000000e+00> : vector<8xf32>
    %26 = vector.multi_reduction <add>, %25, %cst_10 [1] : vector<8x8xf32> to vector<8xf32>
    %27 = vector.shape_cast %26 : vector<8xf32> to vector<8x1xf32>
    %28 = vector.broadcast %27 : vector<8x1xf32> to vector<8x8xf32>
    %29 = arith.divf %25, %28 : vector<8x8xf32>
    %30 = arith.truncf %29 : vector<8x8xf32> to vector<8x8xbf16>
    %cst_11 = arith.constant dense<0.000000e+00> : vector<8x8xf32>
    %31 = tpu.matmul %30, %17, %cst_11 {dimension_numbers = #tpu.dot_dimension_numbers<[1], [0], [0], [1], [0, 0, 1, 1], [], []>} : vector<8x8xbf16>, vector<8x8xbf16>, vector<8x8xf32> -> vector<8x8xf32>
    %32 = vector.extract_strided_slice %14 {offsets = [0, 8], sizes = [8, 8], strides = [1, 1]} : vector<8x96xbf16> to vector<8x8xbf16>
    %33 = vector.extract_strided_slice %14 {offsets = [0, 40], sizes = [8, 8], strides = [1, 1]} : vector<8x96xbf16> to vector<8x8xbf16>
    %34 = vector.extract_strided_slice %14 {offsets = [0, 72], sizes = [8, 8], strides = [1, 1]} : vector<8x96xbf16> to vector<8x8xbf16>
    %cst_12 = arith.constant dense<0.000000e+00> : vector<8x8xf32>
    %35 = tpu.matmul %32, %33, %cst_12 {dimension_numbers = #tpu.dot_dimension_numbers<[1], [1], [0], [0], [0, 0, 1, 0], [], []>} : vector<8x8xbf16>, vector<8x8xbf16>, vector<8x8xf32> -> vector<8x8xf32>
    %cst_13 = arith.constant 0.353553385 : f32
    %36 = vector.broadcast %cst_13 : f32 to vector<8x8xf32>
    %37 = arith.mulf %35, %36 : vector<8x8xf32>
    %cst_14 = arith.constant dense<0xFF800000> : vector<8xf32>
    %38 = vector.multi_reduction <maximumf>, %37, %cst_14 [1] : vector<8x8xf32> to vector<8xf32>
    %39 = vector.shape_cast %38 : vector<8xf32> to vector<8x1xf32>
    %40 = vector.broadcast %39 : vector<8x1xf32> to vector<8x8xf32>
    %41 = arith.subf %37, %40 : vector<8x8xf32>
    %42 = math.exp %41 : vector<8x8xf32>
    %cst_15 = arith.constant dense<0.000000e+00> : vector<8xf32>
    %43 = vector.multi_reduction <add>, %42, %cst_15 [1] : vector<8x8xf32> to vector<8xf32>
    %44 = vector.shape_cast %43 : vector<8xf32> to vector<8x1xf32>
    %45 = vector.broadcast %44 : vector<8x1xf32> to vector<8x8xf32>
    %46 = arith.divf %42, %45 : vector<8x8xf32>
    %47 = arith.truncf %46 : vector<8x8xf32> to vector<8x8xbf16>
    %cst_16 = arith.constant dense<0.000000e+00> : vector<8x8xf32>
    %48 = tpu.matmul %47, %34, %cst_16 {dimension_numbers = #tpu.dot_dimension_numbers<[1], [0], [0], [1], [0, 0, 1, 1], [], []>} : vector<8x8xbf16>, vector<8x8xbf16>, vector<8x8xf32> -> vector<8x8xf32>
    %49 = vector.extract_strided_slice %14 {offsets = [0, 16], sizes = [8, 8], strides = [1, 1]} : vector<8x96xbf16> to vector<8x8xbf16>
    %50 = vector.extract_strided_slice %14 {offsets = [0, 48], sizes = [8, 8], strides = [1, 1]} : vector<8x96xbf16> to vector<8x8xbf16>
    %51 = vector.extract_strided_slice %14 {offsets = [0, 80], sizes = [8, 8], strides = [1, 1]} : vector<8x96xbf16> to vector<8x8xbf16>
    %cst_17 = arith.constant dense<0.000000e+00> : vector<8x8xf32>
    %52 = tpu.matmul %49, %50, %cst_17 {dimension_numbers = #tpu.dot_dimension_numbers<[1], [1], [0], [0], [0, 0, 1, 0], [], []>} : vector<8x8xbf16>, vector<8x8xbf16>, vector<8x8xf32> -> vector<8x8xf32>
    %cst_18 = arith.constant 0.353553385 : f32
    %53 = vector.broadcast %cst_18 : f32 to vector<8x8xf32>
    %54 = arith.mulf %52, %53 : vector<8x8xf32>
    %cst_19 = arith.constant dense<0xFF800000> : vector<8xf32>
    %55 = vector.multi_reduction <maximumf>, %54, %cst_19 [1] : vector<8x8xf32> to vector<8xf32>
    %56 = vector.shape_cast %55 : vector<8xf32> to vector<8x1xf32>
    %57 = vector.broadcast %56 : vector<8x1xf32> to vector<8x8xf32>
    %58 = arith.subf %54, %57 : vector<8x8xf32>
    %59 = math.exp %58 : vector<8x8xf32>
    %cst_20 = arith.constant dense<0.000000e+00> : vector<8xf32>
    %60 = vector.multi_reduction <add>, %59, %cst_20 [1] : vector<8x8xf32> to vector<8xf32>
    %61 = vector.shape_cast %60 : vector<8xf32> to vector<8x1xf32>
    %62 = vector.broadcast %61 : vector<8x1xf32> to vector<8x8xf32>
    %63 = arith.divf %59, %62 : vector<8x8xf32>
    %64 = arith.truncf %63 : vector<8x8xf32> to vector<8x8xbf16>
    %cst_21 = arith.constant dense<0.000000e+00> : vector<8x8xf32>
    %65 = tpu.matmul %64, %51, %cst_21 {dimension_numbers = #tpu.dot_dimension_numbers<[1], [0], [0], [1], [0, 0, 1, 1], [], []>} : vector<8x8xbf16>, vector<8x8xbf16>, vector<8x8xf32> -> vector<8x8xf32>
    %66 = vector.extract_strided_slice %14 {offsets = [0, 24], sizes = [8, 8], strides = [1, 1]} : vector<8x96xbf16> to vector<8x8xbf16>
    %67 = vector.extract_strided_slice %14 {offsets = [0, 56], sizes = [8, 8], strides = [1, 1]} : vector<8x96xbf16> to vector<8x8xbf16>
    %68 = vector.extract_strided_slice %14 {offsets = [0, 88], sizes = [8, 8], strides = [1, 1]} : vector<8x96xbf16> to vector<8x8xbf16>
    %cst_22 = arith.constant dense<0.000000e+00> : vector<8x8xf32>
    %69 = tpu.matmul %66, %67, %cst_22 {dimension_numbers = #tpu.dot_dimension_numbers<[1], [1], [0], [0], [0, 0, 1, 0], [], []>} : vector<8x8xbf16>, vector<8x8xbf16>, vector<8x8xf32> -> vector<8x8xf32>
    %cst_23 = arith.constant 0.353553385 : f32
    %70 = vector.broadcast %cst_23 : f32 to vector<8x8xf32>
    %71 = arith.mulf %69, %70 : vector<8x8xf32>
    %cst_24 = arith.constant dense<0xFF800000> : vector<8xf32>
    %72 = vector.multi_reduction <maximumf>, %71, %cst_24 [1] : vector<8x8xf32> to vector<8xf32>
    %73 = vector.shape_cast %72 : vector<8xf32> to vector<8x1xf32>
    %74 = vector.broadcast %73 : vector<8x1xf32> to vector<8x8xf32>
    %75 = arith.subf %71, %74 : vector<8x8xf32>
    %76 = math.exp %75 : vector<8x8xf32>
    %cst_25 = arith.constant dense<0.000000e+00> : vector<8xf32>
    %77 = vector.multi_reduction <add>, %76, %cst_25 [1] : vector<8x8xf32> to vector<8xf32>
    %78 = vector.shape_cast %77 : vector<8xf32> to vector<8x1xf32>
    %79 = vector.broadcast %78 : vector<8x1xf32> to vector<8x8xf32>
    %80 = arith.divf %76, %79 : vector<8x8xf32>
    %81 = arith.truncf %80 : vector<8x8xf32> to vector<8x8xbf16>
    %cst_26 = arith.constant dense<0.000000e+00> : vector<8x8xf32>
    %82 = tpu.matmul %81, %68, %cst_26 {dimension_numbers = #tpu.dot_dimension_numbers<[1], [0], [0], [1], [0, 0, 1, 1], [], []>} : vector<8x8xbf16>, vector<8x8xbf16>, vector<8x8xf32> -> vector<8x8xf32>
    %83 = tpu.concatenate %31, %48, %65, %82 in 1 : vector<8x8xf32>, vector<8x8xf32>, vector<8x8xf32>, vector<8x8xf32> -> vector<8x32xf32>
    %84 = arith.truncf %83 : vector<8x32xf32> to vector<8x32xbf16>
    %c0_27 = arith.constant 0 : index
    %c0_28 = arith.constant 0 : index
    %c0_29 = arith.constant 0 : index
    %85 = vector.load %arg7[%c0_27, %c0_28, %c0_29] : memref<1x8x32xf32, #tpu.memory_space<vmem>>, vector<1x8x32xf32>
    %86 = vector.shape_cast %85 : vector<1x8x32xf32> to vector<8x32xf32>
    %87 = arith.index_cast %arg1 : i32 to index
    %c0_30 = arith.constant 0 : index
    %c0_31 = arith.constant 0 : index
    %88 = vector.load %arg5[%87, %c0_30, %c0_31] : memref<1x32x32xbf16, #tpu.memory_space<vmem>>, vector<1x32x32xbf16>
    %89 = vector.shape_cast %88 : vector<1x32x32xbf16> to vector<32x32xbf16>
    %cst_32 = arith.constant dense<0.000000e+00> : vector<8x32xf32>
    %90 = tpu.matmul %84, %89, %cst_32 {dimension_numbers = #tpu.dot_dimension_numbers<[1], [0], [0], [1], [0, 0, 1, 1], [], []>} : vector<8x32xbf16>, vector<32x32xbf16>, vector<8x32xf32> -> vector<8x32xf32>
    %91 = arith.addf %86, %90 : vector<8x32xf32>
    %c0_33 = arith.constant 0 : index
    %c0_34 = arith.constant 0 : index
    %c0_35 = arith.constant 0 : index
    %92 = vector.load %arg7[%c0_33, %c0_34, %c0_35] : memref<1x8x32xf32, #tpu.memory_space<vmem>>, vector<1x8x32xf32>
    %93 = vector.shape_cast %92 : vector<1x8x32xf32> to vector<8x32xf32>
    %94 = vector.shape_cast %91 : vector<8x32xf32> to vector<1x8x32xf32>
    tpu.vector_store %arg7[%c0_33, %c0_34, %c0_35], %94 {strides = array<i32>} : memref<1x8x32xf32, #tpu.memory_space<vmem>>, vector<1x8x32xf32>,
    return
  }
  func.func @transform_0(%arg0: i32, %arg1: i32) -> (i32, i32, i32) {
    %c0_i32 = arith.constant 0 : i32
    %c0_i32_0 = arith.constant 0 : i32
    %c0_i32_1 = arith.constant 0 : i32
    return %arg0, %c0_i32, %c0_i32_0 : i32, i32, i32
  }
  func.func @transform_1(%arg0: i32, %arg1: i32) -> (i32, i32, i32) {
    %c0_i32 = arith.constant 0 : i32
    %c0_i32_0 = arith.constant 0 : i32
    %c0_i32_1 = arith.constant 0 : i32
    %c0_i32_2 = arith.constant 0 : i32
    return %c0_i32, %c0_i32_0, %c0_i32_1 : i32, i32, i32
  }
  func.func @transform_2(%arg0: i32, %arg1: i32) -> (i32, i32, i32) {
    %c0_i32 = arith.constant 0 : i32
    %c0_i32_0 = arith.constant 0 : i32
    %c0_i32_1 = arith.constant 0 : i32
    %c0_i32_2 = arith.constant 0 : i32
    return %c0_i32, %c0_i32_0, %c0_i32_1 : i32, i32, i32
  }
  func.func @transform_3(%arg0: i32, %arg1: i32) -> (i32, i32, i32) {
    %c0_i32 = arith.constant 0 : i32
    %c0_i32_0 = arith.constant 0 : i32
    %c0_i32_1 = arith.constant 0 : i32
    %c0_i32_2 = arith.constant 0 : i32
    return %c0_i32, %c0_i32_0, %c0_i32_1 : i32, i32, i32
  }
  func.func @transform_4(%arg0: i32, %arg1: i32) -> (i32, i32) {
    %c0_i32 = arith.constant 0 : i32
    %c0_i32_0 = arith.constant 0 : i32
    %c0_i32_1 = arith.constant 0 : i32
    return %c0_i32, %c0_i32_0 : i32, i32
  }
  func.func @transform_5(%arg0: i32, %arg1: i32) -> (i32, i32, i32) {
    %c0_i32 = arith.constant 0 : i32
    %c0_i32_0 = arith.constant 0 : i32
    %c0_i32_1 = arith.constant 0 : i32
    return %arg0, %c0_i32, %c0_i32_0 : i32, i32, i32
  }
}

</mosaic_0001>

<llo_original>
// kernel: tpu_custom_call.1
$region0: #{tpu_custom_call.1}
  #allocation0 [shape = 'u32[]', space=smem, size = 0x4, offset = 0x4, fixed_abs, tag = 'smem constant byte address 0x4 - core index']
  #allocation1 [shape = 'u32[144,128]{1,0:T(1,128)}', space=vmem, size = 0x12000, scoped, tag = 'internal scratch']
  %s0 = inlined_call_operand.hbm [shape: bf16[2,8,32], index: 0, kind: input, shape index: {}]
  %s1 = inlined_call_operand.hbm [shape: bf16[1,32,96], index: 1, kind: input, shape index: {}]
  %s2 = inlined_call_operand.vmem [shape: f32[1,1,96], index: 2, kind: input, shape index: {}]
  %s3 = inlined_call_operand.hbm [shape: bf16[1,32,32], index: 3, kind: input, shape index: {}]
  %s4 = inlined_call_operand.vmem [shape: f32[1,32], index: 4, kind: input, shape index: {}]
  %s5 = inlined_call_operand.hbm [shape: f32[2,8,32], index: 5, kind: output, shape index: {}]
  %s6 = sld [smem:[#allocation0]]
  $region69: #{tpu_custom_call.1} parent=0
    _
  %s8 = ssub.s32 1, %s6
  %s9 = scalar_select 0, %s8, %s6
  $region1: #{tpu_custom_call.1} parent=0
    #allocation2 [shape = 'u8[4096]{0}', space=vmem, size = 0x1000, scoped, tag = 'input window, operand 0']
    #allocation3 [shape = 's32[2]{0}', space=sflag, size = 0x8, scoped, tag = 'scoped memory for tpu_custom_call.1']
    #allocation4 [shape = 's32[2]{0}', space=sflag, size = 0x8, scoped, tag = 'scoped memory for tpu_custom_call.1']
    #allocation5 [shape = 'u8[8192]{0}', space=vmem, size = 0x2000, scoped, tag = 'input window, operand 1, single buffered']
    #allocation6 [shape = 's32[1]{0}', space=sflag, size = 0x4, scoped, tag = 'scoped memory for tpu_custom_call.1']
    #allocation7 [shape = 'u8[8192]{0}', space=vmem, size = 0x2000, scoped, tag = 'input window, operand 3, single buffered']
    #allocation8 [shape = 'u8[8192]{0}', space=vmem, size = 0x2000, scoped, tag = 'output window, operand 0']
    %10 = vsyncpa [#allocation3], 0
    %s11 = scalar_lea.sflag [#allocation3], 1
    %12 = vsyncpa %s11, 0
    %13 = vsyncpa [#allocation6], 0
    %14 = vsyncpa [#allocation4], 0
    %s15 = scalar_lea.sflag [#allocation4], 1
    %16 = vsyncpa %s15, 0
    loop: start=0, step=1, limit=4
    $region2: #{tpu_custom_call.1} parent=1 // loop_pre_header
      _
    $region3: #{tpu_custom_call.1} parent=1 // loop_header
      %s18 = sphi 0, %s22
      %p19 = scmp.ge.s32.totalorder %s18, 4
      %s25 = sphi 0, %s37
      %s26 = sphi 0, %s33
      %s27 = sphi 0, %s25
      %s28 = sphi 0, %s26
      %s29 = sphi 0, %s27
      %s30 = sphi 0, %s28
      %s40 = sphi 0, %s42
      %s43 = sphi 0, %s40
      %s44 = sphi 0, %s43
      %s60 = sphi 0, %s44
      %s64 = sphi 0, %s64
      %s66 = sphi 0, %s64
      %s67 = sphi 0, %s66
      %s81 = sphi 0, %s67
      %s85 = sphi 0, %s85
      %s87 = sphi 0, %s85
      %s88 = sphi 0, %s87
      %s102 = sphi 0, %s88
      %s106 = sphi 0, %s106
      %s108 = sphi 0, %s106
      %s109 = sphi 0, %s108
      %s123 = sphi 0, %s109
      %s127 = sphi 0, %s127
      %s129 = sphi 0, %s127
      %s130 = sphi 0, %s129
      %s144 = sphi 0, %s130
      %s150 = sphi 0, %s152
      %s153 = sphi 0, %s150
      %s154 = sphi 0, %s153
      %s170 = sphi 0, %s154
    $region4: #{tpu_custom_call.1} parent=1 // loop_header_branch
      %21 = sbr.rel (%p19) target = $region8
    $region5: #{tpu_custom_call.1} parent=1 // loop_body
      %s23 = ssub.s32 %s18, 1
      %s24 = ssub.s32 %s18, 2
      %s31 = sadd.s32 1, %s26
      %p32 = scmp.ge.s32.totalorder %s31, 1
      %s33 = scalar_select %p32, 0, %s31
      %s34 = sadd.s32 1, %s25
      %s35 = scalar_select %p32, %s34, %s25
      %p36 = scmp.ge.s32.totalorder %s35, 2
      %s37 = scalar_select %p36, 0, %s35
      %s38 = ssub.s32 %s25, %s37
      %p39 = scmp.eq.s32.totalorder %s38, 0
      %s41 = sadd.s32 %s40, 1
      %s42 = scalar_select %p39, %s40, %s41
      %p45 = pneg %p39
      %p46 = scmp.eq.s32.totalorder %s18, 1
      %p47 = por %p45, %p46
      %p48 = scmp.ne.s32.totalorder %s40, %s43
      %p49 = scmp.eq.s32.totalorder %s18, 0
      %p50 = por %p48, %p49
      %p51 = scmp.ne.s32.totalorder %s40, %s43
      %p52 = scmp.eq.s32.totalorder %s23, 1
      %p53 = por %p51, %p52
      %p54 = scmp.ne.s32.totalorder %s43, %s44
      %p55 = scmp.eq.s32.totalorder %s23, 0
      %p56 = por %p54, %p55
      %p57 = scmp.ne.s32.totalorder %s43, %s44
      %p58 = scmp.eq.s32.totalorder %s24, 1
      %p59 = por %p57, %p58
      %p61 = scmp.ne.s32.totalorder %s44, %s60
      %p62 = scmp.eq.s32.totalorder %s24, 0
      %p63 = por %p61, %p62
      %s65 = sadd.s32 %s64, 1
      %p68 = scmp.eq.s32.totalorder %s18, 1
      %p69 = scmp.ne.s32.totalorder %s64, %s66
      %p70 = scmp.eq.s32.totalorder %s18, 0
      %p71 = por %p69, %p70
      %p72 = scmp.ne.s32.totalorder %s64, %s66
      %p73 = scmp.eq.s32.totalorder %s23, 1
      %p74 = por %p72, %p73
      %p75 = scmp.ne.s32.totalorder %s66, %s67
      %p76 = scmp.eq.s32.totalorder %s23, 0
      %p77 = por %p75, %p76
      %p78 = scmp.ne.s32.totalorder %s66, %s67
      %p79 = scmp.eq.s32.totalorder %s24, 1
      %p80 = por %p78, %p79
      %p82 = scmp.ne.s32.totalorder %s67, %s81
      %p83 = scmp.eq.s32.totalorder %s24, 0
      %p84 = por %p82, %p83
      %s86 = sadd.s32 %s85, 1
      %p89 = scmp.eq.s32.totalorder %s18, 1
      %p90 = scmp.ne.s32.totalorder %s85, %s87
      %p91 = scmp.eq.s32.totalorder %s18, 0
      %p92 = por %p90, %p91
      %p93 = scmp.ne.s32.totalorder %s85, %s87
      %p94 = scmp.eq.s32.totalorder %s23, 1
      %p95 = por %p93, %p94
      %p96 = scmp.ne.s32.totalorder %s87, %s88
      %p97 = scmp.eq.s32.totalorder %s23, 0
      %p98 = por %p96, %p97
      %p99 = scmp.ne.s32.totalorder %s87, %s88
      %p100 = scmp.eq.s32.totalorder %s24, 1
      %p101 = por %p99, %p100
      %p103 = scmp.ne.s32.totalorder %s88, %s102
      %p104 = scmp.eq.s32.totalorder %s24, 0
      %p105 = por %p103, %p104
      %s107 = sadd.s32 %s106, 1
      %p110 = scmp.eq.s32.totalorder %s18, 1
      %p111 = scmp.ne.s32.totalorder %s106, %s108
      %p112 = scmp.eq.s32.totalorder %s18, 0
      %p113 = por %p111, %p112
      %p114 = scmp.ne.s32.totalorder %s106, %s108
      %p115 = scmp.eq.s32.totalorder %s23, 1
      %p116 = por %p114, %p115
      %p117 = scmp.ne.s32.totalorder %s108, %s109
      %p118 = scmp.eq.s32.totalorder %s23, 0
      %p119 = por %p117, %p118
      %p120 = scmp.ne.s32.totalorder %s108, %s109
      %p121 = scmp.eq.s32.totalorder %s24, 1
      %p122 = por %p120, %p121
      %p124 = scmp.ne.s32.totalorder %s109, %s123
      %p125 = scmp.eq.s32.totalorder %s24, 0
      %p126 = por %p124, %p125
      %s128 = sadd.s32 %s127, 1
      %p131 = scmp.eq.s32.totalorder %s18, 1
      %p132 = scmp.ne.s32.totalorder %s127, %s129
      %p133 = scmp.eq.s32.totalorder %s18, 0
      %p134 = por %p132, %p133
      %p135 = scmp.ne.s32.totalorder %s127, %s129
      %p136 = scmp.eq.s32.totalorder %s23, 1
      %p137 = por %p135, %p136
      %p138 = scmp.ne.s32.totalorder %s129, %s130
      %p139 = scmp.eq.s32.totalorder %s23, 0
      %p140 = por %p138, %p139
      %p141 = scmp.ne.s32.totalorder %s129, %s130
      %p142 = scmp.eq.s32.totalorder %s24, 1
      %p143 = por %p141, %p142
      %p145 = scmp.ne.s32.totalorder %s130, %s144
      %p146 = scmp.eq.s32.totalorder %s24, 0
      %p147 = por %p145, %p146
      %s148 = ssub.s32 %s25, %s37
      %p149 = scmp.eq.s32.totalorder %s148, 0
      %s151 = sadd.s32 %s150, 1
      %s152 = scalar_select %p149, %s150, %s151
      %p155 = pneg %p149
      %p156 = scmp.eq.s32.totalorder %s18, 1
      %p157 = por %p155, %p156
      %p158 = scmp.ne.s32.totalorder %s150, %s153
      %p159 = scmp.eq.s32.totalorder %s18, 0
      %p160 = por %p158, %p159
      %p161 = scmp.ne.s32.totalorder %s150, %s153
      %p162 = scmp.eq.s32.totalorder %s23, 1
      %p163 = por %p161, %p162
      %p164 = scmp.ne.s32.totalorder %s153, %s154
      %p165 = scmp.eq.s32.totalorder %s23, 0
      %p166 = por %p164, %p165
      %p167 = scmp.ne.s32.totalorder %s153, %s154
      %p168 = scmp.eq.s32.totalorder %s24, 1
      %p169 = por %p167, %p168
      %p171 = scmp.ne.s32.totalorder %s154, %s170
      %p172 = scmp.eq.s32.totalorder %s24, 0
      %p173 = por %p171, %p172
      %p174 = scmp.le.s32.totalorder 1, %s18
      %p175 = scmp.lt.s32.totalorder %s18, 3
      %p176 = pnand %p174, %p175
      %p177 = pneg %p176
      // Predicated region
      $region9: #{tpu_custom_call.1} parent=5 // pred_check
        _
      $region10: #{tpu_custom_call.1} parent=5 // pred_check_branch
        %179 = sbr.rel (%p176) target = $region12
      $region11: #{tpu_custom_call.1} parent=5 // pred_region
        %s180 = ssub.s32 %s18, 1
        // Predicated region
        $region13: #{tpu_custom_call.1} parent=11 // pred_check
          %p181 = pneg %p77
        $region14: #{tpu_custom_call.1} parent=11 // pred_check_branch
          %183 = sbr.rel (%p181) target = $region16
        $region15: #{tpu_custom_call.1} parent=11 // pred_region
          %s185 = ssub.s32 256, 256
          %186 = vsyncadd [#allocation6], %s185
          %s187 = sshll.u32 [#allocation5], 4
          %s188 = int_to_ptr.vmem [resolvable:$true] %s187
          %193 = dma.hbm_to_vmem [thread:$0]  %s1, 256, %s188, [#allocation6], 64, 64, 4
        $region16: #{tpu_custom_call.1} parent=11 // pred_fallthru
          _
        // Predicated region
        $region17: #{tpu_custom_call.1} parent=11 // pred_check
          %p194 = pneg %p98
        $region18: #{tpu_custom_call.1} parent=11 // pred_check_branch
          %196 = sbr.rel (%p194) target = $region20
        $region19: #{tpu_custom_call.1} parent=11 // pred_region
          _
        $region20: #{tpu_custom_call.1} parent=11 // pred_fallthru
          _
        // Predicated region
        $region21: #{tpu_custom_call.1} parent=11 // pred_check
          %p197 = pneg %p119
        $region22: #{tpu_custom_call.1} parent=11 // pred_check_branch
          %199 = sbr.rel (%p197) target = $region24
        $region23: #{tpu_custom_call.1} parent=11 // pred_region
          %s201 = ssub.s32 256, 256
          %202 = vsyncadd [#allocation6], %s201
          %s203 = sshll.u32 [#allocation7], 4
          %s204 = int_to_ptr.vmem [resolvable:$true] %s203
          %209 = dma.hbm_to_vmem [thread:$0]  %s3, 256, %s204, [#allocation6], 64, 64, 4
        $region24: #{tpu_custom_call.1} parent=11 // pred_fallthru
          _
        // Predicated region
        $region25: #{tpu_custom_call.1} parent=11 // pred_check
          %p210 = pneg %p140
        $region26: #{tpu_custom_call.1} parent=11 // pred_check_branch
          %212 = sbr.rel (%p210) target = $region28
        $region27: #{tpu_custom_call.1} parent=11 // pred_region
          _
        $region28: #{tpu_custom_call.1} parent=11 // pred_fallthru
          _
      $region12: #{tpu_custom_call.1} parent=5 // pred_fallthru
        _
      %p213 = scmp.lt.s32.totalorder %s18, 2
      // Predicated region
      $region29: #{tpu_custom_call.1} parent=5 // pred_check
        %p214 = pneg %p213
      $region30: #{tpu_custom_call.1} parent=5 // pred_check_branch
        %216 = sbr.rel (%p214) target = $region32
      $region31: #{tpu_custom_call.1} parent=5 // pred_region
        // Predicated region
        $region33: #{tpu_custom_call.1} parent=31 // pred_check
          %p217 = pneg %p50
        $region34: #{tpu_custom_call.1} parent=31 // pred_check_branch
          %219 = sbr.rel (%p217) target = $region36
        $region35: #{tpu_custom_call.1} parent=31 // pred_region
          %s220 = sand.u32 %s40, 1
          %s221 = scalar_lea.sflag [#allocation3], %s220
          %s222 = sand.u32 %s40, 1
          %s223 = smul.addr %s222, 4
          %s224 = scalar_lea.vmem [#allocation2], %s223
          %s226 = ssub.s32 64, 64
          %227 = vsyncadd %s221, %s226
          %s228 = smul.addr %s25, 64
          %s229 = scalar_lea.hbm %s0, %s228
          %s231 = sshll.u32 %s224, 4
          %s232 = int_to_ptr.vmem [resolvable:$true] %s231
          %234 = dma.hbm_to_vmem [thread:$0]  %s229, 64, %s232, %s221
        $region36: #{tpu_custom_call.1} parent=31 // pred_fallthru
          _
      $region32: #{tpu_custom_call.1} parent=5 // pred_fallthru
        _
      %p235 = scmp.le.s32.totalorder 1, %s18
      %p236 = scmp.lt.s32.totalorder %s18, 3
      %p237 = pnand %p235, %p236
      %p238 = pneg %p237
      // Predicated region
      $region37: #{tpu_custom_call.1} parent=5 // pred_check
        _
      $region38: #{tpu_custom_call.1} parent=5 // pred_check_branch
        %240 = sbr.rel (%p237) target = $region40
      $region39: #{tpu_custom_call.1} parent=5 // pred_region
        %s241 = ssub.s32 %s18, 1
        %s242 = sand.u32 %s43, 1
        %s243 = scalar_lea.sflag [#allocation3], %s242
        %s244 = sand.u32 %s43, 1
        %s245 = smul.addr %s244, 4
        %s246 = scalar_lea.vmem [#allocation2], %s245
        // Predicated region
        $region41: #{tpu_custom_call.1} parent=39 // pred_check
          %p247 = pneg %p56
        $region42: #{tpu_custom_call.1} parent=39 // pred_check_branch
          %249 = sbr.rel (%p247) target = $region44
        $region43: #{tpu_custom_call.1} parent=39 // pred_region
          %250 = dma.done %s243, 64
        $region44: #{tpu_custom_call.1} parent=39 // pred_fallthru
          _
        // Predicated region
        $region45: #{tpu_custom_call.1} parent=39 // pred_check
          %p251 = pneg %p77
        $region46: #{tpu_custom_call.1} parent=39 // pred_check_branch
          %253 = sbr.rel (%p251) target = $region48
        $region47: #{tpu_custom_call.1} parent=39 // pred_region
          %254 = dma.done [#allocation6], 256
        $region48: #{tpu_custom_call.1} parent=39 // pred_fallthru
          _
        // Predicated region
        $region49: #{tpu_custom_call.1} parent=39 // pred_check
          %p255 = pneg %p119
        $region50: #{tpu_custom_call.1} parent=39 // pred_check_branch
          %257 = sbr.rel (%p255) target = $region52
        $region51: #{tpu_custom_call.1} parent=39 // pred_region
          %258 = dma.done [#allocation6], 256
        $region52: #{tpu_custom_call.1} parent=39 // pred_fallthru
          _
        %s259 = sand.u32 %s43, 1
        %s260 = scalar_lea.sflag [#allocation3], %s259
        %s261 = sand.u32 %s43, 1
        %s262 = smul.addr %s261, 4
        %s263 = scalar_lea.vmem [#allocation2], %s262
        %p264 = pneg %p56
        %p265 = pneg %p53
        %p266 = pneg %p77
        %p267 = pneg %p74
        %p268 = pneg %p98
        %p269 = pneg %p95
        %p270 = pneg %p119
        %p271 = pneg %p116
        %p272 = pneg %p140
        %p273 = pneg %p137
        %p274 = pneg %p166
        %p275 = pneg %p163
        %s276 = sand.u32 %s153, 1
        %s277 = scalar_lea.sflag [#allocation4], %s276
        %s278 = sand.u32 %s153, 1
        %s279 = smul.addr %s278, 8
        %s280 = scalar_lea.vmem [#allocation8], %s279
        %p282 = scmp.eq.s32.totalorder %s28, 0
        // Predicated region
        $region53: #{tpu_custom_call.1} parent=39 // pred_check
          %p283 = pneg %p282
        $region54: #{tpu_custom_call.1} parent=39 // pred_check_branch
          %285 = sbr.rel (%p283) target = $region56
        $region55: #{tpu_custom_call.1} parent=39 // pred_region
          %v286 = vld [vmem:[%s4] sm:$0x1]
          %v288 = vlaneseq
          %v289 = vshrl.u32 %v288, 7
          %v290 = vsub.s32 0, %v289
          %v291 = vrot.slane %v286, %v290
          %vm293 = vcmask 261120
          %294 = vst.msk [vmem:[%s280] sm:$0xff] %vm293, %v291
        $region56: #{tpu_custom_call.1} parent=39 // pred_fallthru
          _
        %v295 = vld [vmem:[%s246] sm:$0xf]
        %s296 = smul.u32 %s28, 4
        %s297 = smul.addr %s296, 4
        %s298 = scalar_lea.vmem [#allocation5], %s297
        %v299 = vld [vmem:[%s298] sm:$0xf]
        %v300 = vld [vmem:[%s298 + $0x4] sm:$0xf]
        %v301 = vld [vmem:[%s298 + $0x8] sm:$0xf]
        %v302 = vld [vmem:[%s298 + $0xc] sm:$0xf]
        %s303 = scalar_lea.vmem %s2, %s28
        %v304 = vld [vmem:[%s303] sm:$0x1]
        %v306 = vlaneseq
        %v307 = vshrl.u32 %v306, 7
        %v308 = vsub.s32 0, %v307
        %v309 = vrot.slane %v304, %v308
        %v315 = vunpack.c.l.b16 %v299
        %v316 = vunpack.c.l.b16 %v300
        %v317 = vunpack.c.l.b16 %v301
        %v318 = vunpack.c.l.b16 %v302
        %v319 = vpack.c.b16 %v316, %v315
        %v320 = vpack.c.b16 %v318, %v317
        %vm323 = vcmask 261120
        %v325 = vsel %vm323, %v295, 0
        %327 = vmatprep.subr.bf16.mxu0 0
        %328 = vmatpush1.bf16.msra.mxu0 %v319
        %329 = vmatprep.subr.bf16.mxu0 0
        %330 = vmatpush1.bf16.msra.mxu0 %v320
        %331 = vmatprep.subr.bf16.mxu0 0
        %332 = vmatpush1.bf16.msra.mxu0 0
        %333 = vmatprep.subr.bf16.mxu0 0
        %334 = vmatpush1.bf16.msra.mxu0 0
        %335 = vmatprep.subr.bf16.mxu0 0
        %336 = vmatpush1.bf16.msra.mxu0 0
        %337 = vmatprep.subr.bf16.mxu0 0
        %338 = vmatpush1.bf16.msra.mxu0 0
        %339 = vmatprep.subr.bf16.mxu0 0
        %340 = vmatpush1.bf16.msra.mxu0 0
        %341 = vmatprep.subr.bf16.mxu0 0
        %342 = vmatpush1.bf16.msra.mxu0 0
        %343 = vmatprep.subr.bf16.mxu0 0
        %344 = vmatpush1.bf16.msra.mxu0 0
        %345 = vmatprep.subr.bf16.mxu0 0
        %346 = vmatpush1.bf16.msra.mxu0 0
        %347 = vmatprep.subr.bf16.mxu0 0
        %348 = vmatpush1.bf16.msra.mxu0 0
        %349 = vmatprep.subr.bf16.mxu0 0
        %350 = vmatpush1.bf16.msra.mxu0 0
        %351 = vmatprep.subr.bf16.mxu0 0
        %352 = vmatpush1.bf16.msra.mxu0 0
        %353 = vmatprep.subr.bf16.mxu0 0
        %354 = vmatpush1.bf16.msra.mxu0 0
        %355 = vmatprep.subr.bf16.mxu0 0
        %356 = vmatpush1.bf16.msra.mxu0 0
        %357 = vmatprep.subr.bf16.mxu0 0
        %358 = vmatpush1.bf16.msra.mxu0 0
        %359 = vmatprep.mubr.bf16.mxu0 0
        %360 = vmatmul.mubr.bf16.gmra.mrb[0].mxu0 %v325
        %v361 = vpop.f32.mrb[0].mxu0
        %v362 = vadd.f32 %v309, %v361
        %v363 = vpop.f32.mrb[0].mxu0
        %v364 = vpop.f32.mrb[0].mxu0
        %v365 = vpop.f32.mrb[0].mxu0
        %366 = vdwg.mxu0
        %v367 = vpack.c.bf16 %v362, %v362
        %369 = vrot.lane.b32.xlu0 %v367, 96
        %v370 = vpop.permute.xlu0 %369
        %vm371 = vcmask 64512
        %v373 = vsel %vm371, %v367, 0
        %v376 = vsel %vm371, %v370, 0
        %378 = vmatprep.subr.bf16.mxu0 0
        %379 = vmatpush1.bf16.xpose.msra.mxu0 %v376
        %380 = vmatprep.subr.bf16.mxu0 0
        %381 = vmatpush1.bf16.xpose.msra.mxu0 0
        %382 = vmatprep.subr.bf16.mxu0 0
        %383 = vmatpush1.bf16.xpose.msra.mxu0 0
        %384 = vmatprep.subr.bf16.mxu0 0
        %385 = vmatpush1.bf16.xpose.msra.mxu0 0
        %386 = vmatprep.subr.bf16.mxu0 0
        %387 = vmatpush1.bf16.xpose.msra.mxu0 0
        %388 = vmatprep.subr.bf16.mxu0 0
        %389 = vmatpush1.bf16.xpose.msra.mxu0 0
        %390 = vmatprep.subr.bf16.mxu0 0
        %391 = vmatpush1.bf16.xpose.msra.mxu0 0
        %392 = vmatprep.subr.bf16.mxu0 0
        %393 = vmatpush1.bf16.xpose.msra.mxu0 0
        %394 = vmatprep.subr.bf16.mxu0 0
        %395 = vmatpush1.bf16.xpose.msra.mxu0 0
        %396 = vmatprep.subr.bf16.mxu0 0
        %397 = vmatpush1.bf16.xpose.msra.mxu0 0
        %398 = vmatprep.subr.bf16.mxu0 0
        %399 = vmatpush1.bf16.xpose.msra.mxu0 0
        %400 = vmatprep.subr.bf16.mxu0 0
        %401 = vmatpush1.bf16.xpose.msra.mxu0 0
        %402 = vmatprep.subr.bf16.mxu0 0
        %403 = vmatpush1.bf16.xpose.msra.mxu0 0
        %404 = vmatprep.subr.bf16.mxu0 0
        %405 = vmatpush1.bf16.xpose.msra.mxu0 0
        %406 = vmatprep.subr.bf16.mxu0 0
        %407 = vmatpush1.bf16.xpose.msra.mxu0 0
        %408 = vmatprep.subr.bf16.mxu0 0
        %409 = vmatpush1.bf16.xpose.msra.mxu0 0
        %410 = vmatprep.mubr.bf16.mxu0 0
        %411 = vmatmul.mubr.bf16.gmra.mrb[0].mxu0 %v373
        %v412 = vpop.f32.mrb[0].mxu0
        %v413 = vadd.f32 0.0, %v412
        %v414 = vpop.f32.mrb[0].mxu0
        %v415 = vpop.f32.mrb[0].mxu0
        %v416 = vpop.f32.mrb[0].mxu0
        %417 = vdwg.mxu0
        %v418 = vmul.f32 %v413, 0.35355338
        %v419 = vsel %vm371, %v418, -inf
        %420 = vmax.xlane.f32.xlu0 %v419
        %v421 = vpop.xlane.xlu0 %420
        %v422 = vsub.f32 %v418, %v421
        %v423 = vmul.f32 %v422, 1.442695
        %v424 = vpow.pop %v423
        %v425 = vsel %vm371, %v424, 0.0
        %426 = vadd.xlane.f32.xlu0 %v425
        %v427 = vpop.xlane.xlu0 %426
        %v428 = vrcp.pop %v427
        %v429 = vmul.f32 %v424, %v428
        %v430 = vpack.c.bf16 %v429, %v429
        %431 = vrot.lane.b32.xlu0 %v367, 64
        %v432 = vpop.permute.xlu0 %431
        %v434 = vsel %vm371, %v430, 0
        %vm436 = vcmask 1043456
        %v438 = vsel %vm436, %v432, 0
        %440 = vmatprep.subr.bf16.mxu0 0
        %441 = vmatpush1.bf16.msra.mxu0 %v438
        %442 = vmatprep.subr.bf16.mxu0 0
        %443 = vmatpush1.bf16.msra.mxu0 0
        %444 = vmatprep.subr.bf16.mxu0 0
        %445 = vmatpush1.bf16.msra.mxu0 0
        %446 = vmatprep.subr.bf16.mxu0 0
        %447 = vmatpush1.bf16.msra.mxu0 0
        %448 = vmatprep.subr.bf16.mxu0 0
        %449 = vmatpush1.bf16.msra.mxu0 0
        %450 = vmatprep.subr.bf16.mxu0 0
        %451 = vmatpush1.bf16.msra.mxu0 0
        %452 = vmatprep.subr.bf16.mxu0 0
        %453 = vmatpush1.bf16.msra.mxu0 0
        %454 = vmatprep.subr.bf16.mxu0 0
        %455 = vmatpush1.bf16.msra.mxu0 0
        %456 = vmatprep.subr.bf16.mxu0 0
        %457 = vmatpush1.bf16.msra.mxu0 0
        %458 = vmatprep.subr.bf16.mxu0 0
        %459 = vmatpush1.bf16.msra.mxu0 0
        %460 = vmatprep.subr.bf16.mxu0 0
        %461 = vmatpush1.bf16.msra.mxu0 0
        %462 = vmatprep.subr.bf16.mxu0 0
        %463 = vmatpush1.bf16.msra.mxu0 0
        %464 = vmatprep.subr.bf16.mxu0 0
        %465 = vmatpush1.bf16.msra.mxu0 0
        %466 = vmatprep.subr.bf16.mxu0 0
        %467 = vmatpush1.bf16.msra.mxu0 0
        %468 = vmatprep.subr.bf16.mxu0 0
        %469 = vmatpush1.bf16.msra.mxu0 0
        %470 = vmatprep.subr.bf16.mxu0 0
        %471 = vmatpush1.bf16.msra.mxu0 0
        %472 = vmatprep.mubr.bf16.mxu0 0
        %473 = vmatmul.mubr.bf16.gmra.mrb[0].mxu0 %v434
        %v474 = vpop.f32.mrb[0].mxu0
        %v475 = vadd.f32 0.0, %v474
        %v476 = vpop.f32.mrb[0].mxu0
        %v477 = vpop.f32.mrb[0].mxu0
        %v478 = vpop.f32.mrb[0].mxu0
        %479 = vdwg.mxu0
        %480 = vrot.lane.b32.xlu0 %v367, 120
        %v481 = vpop.permute.xlu0 %480
        %482 = vrot.lane.b32.xlu0 %v367, 88
        %v483 = vpop.permute.xlu0 %482
        %v485 = vsel %vm371, %v481, 0
        %v488 = vsel %vm371, %v483, 0
        %490 = vmatprep.subr.bf16.mxu0 0
        %491 = vmatpush1.bf16.xpose.msra.mxu0 %v488
        %492 = vmatprep.subr.bf16.mxu0 0
        %493 = vmatpush1.bf16.xpose.msra.mxu0 0
        %494 = vmatprep.subr.bf16.mxu0 0
        %495 = vmatpush1.bf16.xpose.msra.mxu0 0
        %496 = vmatprep.subr.bf16.mxu0 0
        %497 = vmatpush1.bf16.xpose.msra.mxu0 0
        %498 = vmatprep.subr.bf16.mxu0 0
        %499 = vmatpush1.bf16.xpose.msra.mxu0 0
        %500 = vmatprep.subr.bf16.mxu0 0
        %501 = vmatpush1.bf16.xpose.msra.mxu0 0
        %502 = vmatprep.subr.bf16.mxu0 0
        %503 = vmatpush1.bf16.xpose.msra.mxu0 0
        %504 = vmatprep.subr.bf16.mxu0 0
        %505 = vmatpush1.bf16.xpose.msra.mxu0 0
        %506 = vmatprep.subr.bf16.mxu0 0
        %507 = vmatpush1.bf16.xpose.msra.mxu0 0
        %508 = vmatprep.subr.bf16.mxu0 0
        %509 = vmatpush1.bf16.xpose.msra.mxu0 0
        %510 = vmatprep.subr.bf16.mxu0 0
        %511 = vmatpush1.bf16.xpose.msra.mxu0 0
        %512 = vmatprep.subr.bf16.mxu0 0
        %513 = vmatpush1.bf16.xpose.msra.mxu0 0
        %514 = vmatprep.subr.bf16.mxu0 0
        %515 = vmatpush1.bf16.xpose.msra.mxu0 0
        %516 = vmatprep.subr.bf16.mxu0 0
        %517 = vmatpush1.bf16.xpose.msra.mxu0 0
        %518 = vmatprep.subr.bf16.mxu0 0
        %519 = vmatpush1.bf16.xpose.msra.mxu0 0
        %520 = vmatprep.subr.bf16.mxu0 0
        %521 = vmatpush1.bf16.xpose.msra.mxu0 0
        %522 = vmatprep.mubr.bf16.mxu0 0
        %523 = vmatmul.mubr.bf16.gmra.mrb[0].mxu0 %v485
        %v524 = vpop.f32.mrb[0].mxu0
        %v525 = vadd.f32 0.0, %v524
        %v526 = vpop.f32.mrb[0].mxu0
        %v527 = vpop.f32.mrb[0].mxu0
        %v528 = vpop.f32.mrb[0].mxu0
        %529 = vdwg.mxu0
        %v530 = vmul.f32 %v525, 0.35355338
        %v531 = vsel %vm371, %v530, -inf
        %532 = vmax.xlane.f32.xlu0 %v531
        %v533 = vpop.xlane.xlu0 %532
        %v534 = vsub.f32 %v530, %v533
        %v535 = vmul.f32 %v534, 1.442695
        %v536 = vpow.pop %v535
        %v537 = vsel %vm371, %v536, 0.0
        %538 = vadd.xlane.f32.xlu0 %v537
        %v539 = vpop.xlane.xlu0 %538
        %v540 = vrcp.pop %v539
        %v541 = vmul.f32 %v536, %v540
        %v542 = vpack.c.bf16 %v541, %v541
        %543 = vrot.lane.b32.xlu0 %v367, 56
        %v544 = vpop.permute.xlu0 %543
        %v546 = vsel %vm371, %v542, 0
        %v549 = vsel %vm436, %v544, 0
        %551 = vmatprep.subr.bf16.mxu0 0
        %552 = vmatpush1.bf16.msra.mxu0 %v549
        %553 = vmatprep.subr.bf16.mxu0 0
        %554 = vmatpush1.bf16.msra.mxu0 0
        %555 = vmatprep.subr.bf16.mxu0 0
        %556 = vmatpush1.bf16.msra.mxu0 0
        %557 = vmatprep.subr.bf16.mxu0 0
        %558 = vmatpush1.bf16.msra.mxu0 0
        %559 = vmatprep.subr.bf16.mxu0 0
        %560 = vmatpush1.bf16.msra.mxu0 0
        %561 = vmatprep.subr.bf16.mxu0 0
        %562 = vmatpush1.bf16.msra.mxu0 0
        %563 = vmatprep.subr.bf16.mxu0 0
        %564 = vmatpush1.bf16.msra.mxu0 0
        %565 = vmatprep.subr.bf16.mxu0 0
        %566 = vmatpush1.bf16.msra.mxu0 0
        %567 = vmatprep.subr.bf16.mxu0 0
        %568 = vmatpush1.bf16.msra.mxu0 0
        %569 = vmatprep.subr.bf16.mxu0 0
        %570 = vmatpush1.bf16.msra.mxu0 0
        %571 = vmatprep.subr.bf16.mxu0 0
        %572 = vmatpush1.bf16.msra.mxu0 0
        %573 = vmatprep.subr.bf16.mxu0 0
        %574 = vmatpush1.bf16.msra.mxu0 0
        %575 = vmatprep.subr.bf16.mxu0 0
        %576 = vmatpush1.bf16.msra.mxu0 0
        %577 = vmatprep.subr.bf16.mxu0 0
        %578 = vmatpush1.bf16.msra.mxu0 0
        %579 = vmatprep.subr.bf16.mxu0 0
        %580 = vmatpush1.bf16.msra.mxu0 0
        %581 = vmatprep.subr.bf16.mxu0 0
        %582 = vmatpush1.bf16.msra.mxu0 0
        %583 = vmatprep.mubr.bf16.mxu0 0
        %584 = vmatmul.mubr.bf16.gmra.mrb[0].mxu0 %v546
        %v585 = vpop.f32.mrb[0].mxu0
        %v586 = vadd.f32 0.0, %v585
        %v587 = vpop.f32.mrb[0].mxu0
        %v588 = vpop.f32.mrb[0].mxu0
        %v589 = vpop.f32.mrb[0].mxu0
        %590 = vdwg.mxu0
        %591 = vrot.lane.b32.xlu0 %v367, 112
        %v592 = vpop.permute.xlu0 %591
        %593 = vrot.lane.b32.xlu0 %v367, 80
        %v594 = vpop.permute.xlu0 %593
        %v596 = vsel %vm371, %v592, 0
        %v599 = vsel %vm371, %v594, 0
        %601 = vmatprep.subr.bf16.mxu0 0
        %602 = vmatpush1.bf16.xpose.msra.mxu0 %v599
        %603 = vmatprep.subr.bf16.mxu0 0
        %604 = vmatpush1.bf16.xpose.msra.mxu0 0
        %605 = vmatprep.subr.bf16.mxu0 0
        %606 = vmatpush1.bf16.xpose.msra.mxu0 0
        %607 = vmatprep.subr.bf16.mxu0 0
        %608 = vmatpush1.bf16.xpose.msra.mxu0 0
        %609 = vmatprep.subr.bf16.mxu0 0
        %610 = vmatpush1.bf16.xpose.msra.mxu0 0
        %611 = vmatprep.subr.bf16.mxu0 0
        %612 = vmatpush1.bf16.xpose.msra.mxu0 0
        %613 = vmatprep.subr.bf16.mxu0 0
        %614 = vmatpush1.bf16.xpose.msra.mxu0 0
        %615 = vmatprep.subr.bf16.mxu0 0
        %616 = vmatpush1.bf16.xpose.msra.mxu0 0
        %617 = vmatprep.subr.bf16.mxu0 0
        %618 = vmatpush1.bf16.xpose.msra.mxu0 0
        %619 = vmatprep.subr.bf16.mxu0 0
        %620 = vmatpush1.bf16.xpose.msra.mxu0 0
        %621 = vmatprep.subr.bf16.mxu0 0
        %622 = vmatpush1.bf16.xpose.msra.mxu0 0
        %623 = vmatprep.subr.bf16.mxu0 0
        %624 = vmatpush1.bf16.xpose.msra.mxu0 0
        %625 = vmatprep.subr.bf16.mxu0 0
        %626 = vmatpush1.bf16.xpose.msra.mxu0 0
        %627 = vmatprep.subr.bf16.mxu0 0
        %628 = vmatpush1.bf16.xpose.msra.mxu0 0
        %629 = vmatprep.subr.bf16.mxu0 0
        %630 = vmatpush1.bf16.xpose.msra.mxu0 0
        %631 = vmatprep.subr.bf16.mxu0 0
        %632 = vmatpush1.bf16.xpose.msra.mxu0 0
        %633 = vmatprep.mubr.bf16.mxu0 0
        %634 = vmatmul.mubr.bf16.gmra.mrb[0].mxu0 %v596
        %v635 = vpop.f32.mrb[0].mxu0
        %v636 = vadd.f32 0.0, %v635
        %v637 = vpop.f32.mrb[0].mxu0
        %v638 = vpop.f32.mrb[0].mxu0
        %v639 = vpop.f32.mrb[0].mxu0
        %640 = vdwg.mxu0
        %v641 = vmul.f32 %v636, 0.35355338
        %v642 = vsel %vm371, %v641, -inf
        %643 = vmax.xlane.f32.xlu0 %v642
        %v644 = vpop.xlane.xlu0 %643
        %v645 = vsub.f32 %v641, %v644
        %v646 = vmul.f32 %v645, 1.442695
        %v647 = vpow.pop %v646
        %v648 = vsel %vm371, %v647, 0.0
        %649 = vadd.xlane.f32.xlu0 %v648
        %v650 = vpop.xlane.xlu0 %649
        %v651 = vrcp.pop %v650
        %v652 = vmul.f32 %v647, %v651
        %v653 = vpack.c.bf16 %v652, %v652
        %654 = vrot.lane.b32.xlu0 %v367, 48
        %v655 = vpop.permute.xlu0 %654
        %v657 = vsel %vm371, %v653, 0
        %v660 = vsel %vm436, %v655, 0
        %662 = vmatprep.subr.bf16.mxu0 0
        %663 = vmatpush1.bf16.msra.mxu0 %v660
        %664 = vmatprep.subr.bf16.mxu0 0
        %665 = vmatpush1.bf16.msra.mxu0 0
        %666 = vmatprep.subr.bf16.mxu0 0
        %667 = vmatpush1.bf16.msra.mxu0 0
        %668 = vmatprep.subr.bf16.mxu0 0
        %669 = vmatpush1.bf16.msra.mxu0 0
        %670 = vmatprep.subr.bf16.mxu0 0
        %671 = vmatpush1.bf16.msra.mxu0 0
        %672 = vmatprep.subr.bf16.mxu0 0
        %673 = vmatpush1.bf16.msra.mxu0 0
        %674 = vmatprep.subr.bf16.mxu0 0
        %675 = vmatpush1.bf16.msra.mxu0 0
        %676 = vmatprep.subr.bf16.mxu0 0
        %677 = vmatpush1.bf16.msra.mxu0 0
        %678 = vmatprep.subr.bf16.mxu0 0
        %679 = vmatpush1.bf16.msra.mxu0 0
        %680 = vmatprep.subr.bf16.mxu0 0
        %681 = vmatpush1.bf16.msra.mxu0 0
        %682 = vmatprep.subr.bf16.mxu0 0
        %683 = vmatpush1.bf16.msra.mxu0 0
        %684 = vmatprep.subr.bf16.mxu0 0
        %685 = vmatpush1.bf16.msra.mxu0 0
        %686 = vmatprep.subr.bf16.mxu0 0
        %687 = vmatpush1.bf16.msra.mxu0 0
        %688 = vmatprep.subr.bf16.mxu0 0
        %689 = vmatpush1.bf16.msra.mxu0 0
        %690 = vmatprep.subr.bf16.mxu0 0
        %691 = vmatpush1.bf16.msra.mxu0 0
        %692 = vmatprep.subr.bf16.mxu0 0
        %693 = vmatpush1.bf16.msra.mxu0 0
        %694 = vmatprep.mubr.bf16.mxu0 0
        %695 = vmatmul.mubr.bf16.gmra.mrb[0].mxu0 %v657
        %v696 = vpop.f32.mrb[0].mxu0
        %v697 = vadd.f32 0.0, %v696
        %v698 = vpop.f32.mrb[0].mxu0
        %v699 = vpop.f32.mrb[0].mxu0
        %v700 = vpop.f32.mrb[0].mxu0
        %701 = vdwg.mxu0
        %702 = vrot.lane.b32.xlu0 %v367, 104
        %v703 = vpop.permute.xlu0 %702
        %704 = vrot.lane.b32.xlu0 %v367, 72
        %v705 = vpop.permute.xlu0 %704
        %v707 = vsel %vm371, %v703, 0
        %v710 = vsel %vm371, %v705, 0
        %712 = vmatprep.subr.bf16.mxu0 0
        %713 = vmatpush1.bf16.xpose.msra.mxu0 %v710
        %714 = vmatprep.subr.bf16.mxu0 0
        %715 = vmatpush1.bf16.xpose.msra.mxu0 0
        %716 = vmatprep.subr.bf16.mxu0 0
        %717 = vmatpush1.bf16.xpose.msra.mxu0 0
        %718 = vmatprep.subr.bf16.mxu0 0
        %719 = vmatpush1.bf16.xpose.msra.mxu0 0
        %720 = vmatprep.subr.bf16.mxu0 0
        %721 = vmatpush1.bf16.xpose.msra.mxu0 0
        %722 = vmatprep.subr.bf16.mxu0 0
        %723 = vmatpush1.bf16.xpose.msra.mxu0 0
        %724 = vmatprep.subr.bf16.mxu0 0
        %725 = vmatpush1.bf16.xpose.msra.mxu0 0
        %726 = vmatprep.subr.bf16.mxu0 0
        %727 = vmatpush1.bf16.xpose.msra.mxu0 0
        %728 = vmatprep.subr.bf16.mxu0 0
        %729 = vmatpush1.bf16.xpose.msra.mxu0 0
        %730 = vmatprep.subr.bf16.mxu0 0
        %731 = vmatpush1.bf16.xpose.msra.mxu0 0
        %732 = vmatprep.subr.bf16.mxu0 0
        %733 = vmatpush1.bf16.xpose.msra.mxu0 0
        %734 = vmatprep.subr.bf16.mxu0 0
        %735 = vmatpush1.bf16.xpose.msra.mxu0 0
        %736 = vmatprep.subr.bf16.mxu0 0
        %737 = vmatpush1.bf16.xpose.msra.mxu0 0
        %738 = vmatprep.subr.bf16.mxu0 0
        %739 = vmatpush1.bf16.xpose.msra.mxu0 0
        %740 = vmatprep.subr.bf16.mxu0 0
        %741 = vmatpush1.bf16.xpose.msra.mxu0 0
        %742 = vmatprep.subr.bf16.mxu0 0
        %743 = vmatpush1.bf16.xpose.msra.mxu0 0
        %744 = vmatprep.mubr.bf16.mxu0 0
        %745 = vmatmul.mubr.bf16.gmra.mrb[0].mxu0 %v707
        %v746 = vpop.f32.mrb[0].mxu0
        %v747 = vadd.f32 0.0, %v746
        %v748 = vpop.f32.mrb[0].mxu0
        %v749 = vpop.f32.mrb[0].mxu0
        %v750 = vpop.f32.mrb[0].mxu0
        %751 = vdwg.mxu0
        %v752 = vmul.f32 %v747, 0.35355338
        %v753 = vsel %vm371, %v752, -inf
        %754 = vmax.xlane.f32.xlu0 %v753
        %v755 = vpop.xlane.xlu0 %754
        %v756 = vsub.f32 %v752, %v755
        %v757 = vmul.f32 %v756, 1.442695
        %v758 = vpow.pop %v757
        %v759 = vsel %vm371, %v758, 0.0
        %760 = vadd.xlane.f32.xlu0 %v759
        %v761 = vpop.xlane.xlu0 %760
        %v762 = vrcp.pop %v761
        %v763 = vmul.f32 %v758, %v762
        %v764 = vpack.c.bf16 %v763, %v763
        %765 = vrot.lane.b32.xlu0 %v367, 40
        %v766 = vpop.permute.xlu0 %765
        %v768 = vsel %vm371, %v764, 0
        %v771 = vsel %vm436, %v766, 0
        %773 = vmatprep.subr.bf16.mxu0 0
        %774 = vmatpush1.bf16.msra.mxu0 %v771
        %775 = vmatprep.subr.bf16.mxu0 0
        %776 = vmatpush1.bf16.msra.mxu0 0
        %777 = vmatprep.subr.bf16.mxu0 0
        %778 = vmatpush1.bf16.msra.mxu0 0
        %779 = vmatprep.subr.bf16.mxu0 0
        %780 = vmatpush1.bf16.msra.mxu0 0
        %781 = vmatprep.subr.bf16.mxu0 0
        %782 = vmatpush1.bf16.msra.mxu0 0
        %783 = vmatprep.subr.bf16.mxu0 0
        %784 = vmatpush1.bf16.msra.mxu0 0
        %785 = vmatprep.subr.bf16.mxu0 0
        %786 = vmatpush1.bf16.msra.mxu0 0
        %787 = vmatprep.subr.bf16.mxu0 0
        %788 = vmatpush1.bf16.msra.mxu0 0
        %789 = vmatprep.subr.bf16.mxu0 0
        %790 = vmatpush1.bf16.msra.mxu0 0
        %791 = vmatprep.subr.bf16.mxu0 0
        %792 = vmatpush1.bf16.msra.mxu0 0
        %793 = vmatprep.subr.bf16.mxu0 0
        %794 = vmatpush1.bf16.msra.mxu0 0
        %795 = vmatprep.subr.bf16.mxu0 0
        %796 = vmatpush1.bf16.msra.mxu0 0
        %797 = vmatprep.subr.bf16.mxu0 0
        %798 = vmatpush1.bf16.msra.mxu0 0
        %799 = vmatprep.subr.bf16.mxu0 0
        %800 = vmatpush1.bf16.msra.mxu0 0
        %801 = vmatprep.subr.bf16.mxu0 0
        %802 = vmatpush1.bf16.msra.mxu0 0
        %803 = vmatprep.subr.bf16.mxu0 0
        %804 = vmatpush1.bf16.msra.mxu0 0
        %805 = vmatprep.mubr.bf16.mxu0 0
        %806 = vmatmul.mubr.bf16.gmra.mrb[0].mxu0 %v768
        %v807 = vpop.f32.mrb[0].mxu0
        %v808 = vadd.f32 0.0, %v807
        %v809 = vpop.f32.mrb[0].mxu0
        %v810 = vpop.f32.mrb[0].mxu0
        %v811 = vpop.f32.mrb[0].mxu0
        %812 = vdwg.mxu0
        %814 = vrot.lane.b32.xlu0 %v586, 8
        %v815 = vpop.permute.xlu0 %814
        %818 = vrot.lane.b32.xlu0 %v697, 16
        %v819 = vpop.permute.xlu0 %818
        %822 = vrot.lane.b32.xlu0 %v808, 24
        %v823 = vpop.permute.xlu0 %822
        %v825 = vsel %vm371, %v475, %v815
        %vm826 = vcmask 130048
        %v827 = vsel %vm826, %v825, %v819
        %vm828 = vcmask 195584
        %v829 = vsel %vm828, %v827, %v823
        %v830 = vpack.c.bf16 %v829, %v829
        %v831 = vld [vmem:[%s280] sm:$0xff]
        %s832 = smul.addr %s296, 4
        %s833 = scalar_lea.vmem [#allocation7], %s832
        %v834 = vld [vmem:[%s833] sm:$0xf]
        %v835 = vld [vmem:[%s833 + $0x4] sm:$0xf]
        %v836 = vld [vmem:[%s833 + $0x8] sm:$0xf]
        %v837 = vld [vmem:[%s833 + $0xc] sm:$0xf]
        %v842 = vunpack.c.l.b16 %v834
        %v843 = vunpack.c.l.b16 %v835
        %v844 = vunpack.c.l.b16 %v836
        %v845 = vunpack.c.l.b16 %v837
        %v846 = vpack.c.b16 %v843, %v842
        %v847 = vpack.c.b16 %v845, %v844
        %v851 = vsel %vm323, %v830, 0
        %853 = vmatprep.subr.bf16.mxu0 0
        %854 = vmatpush1.bf16.msra.mxu0 %v846
        %855 = vmatprep.subr.bf16.mxu0 0
        %856 = vmatpush1.bf16.msra.mxu0 %v847
        %857 = vmatprep.subr.bf16.mxu0 0
        %858 = vmatpush1.bf16.msra.mxu0 0
        %859 = vmatprep.subr.bf16.mxu0 0
        %860 = vmatpush1.bf16.msra.mxu0 0
        %861 = vmatprep.subr.bf16.mxu0 0
        %862 = vmatpush1.bf16.msra.mxu0 0
        %863 = vmatprep.subr.bf16.mxu0 0
        %864 = vmatpush1.bf16.msra.mxu0 0
        %865 = vmatprep.subr.bf16.mxu0 0
        %866 = vmatpush1.bf16.msra.mxu0 0
        %867 = vmatprep.subr.bf16.mxu0 0
        %868 = vmatpush1.bf16.msra.mxu0 0
        %869 = vmatprep.subr.bf16.mxu0 0
        %870 = vmatpush1.bf16.msra.mxu0 0
        %871 = vmatprep.subr.bf16.mxu0 0
        %872 = vmatpush1.bf16.msra.mxu0 0
        %873 = vmatprep.subr.bf16.mxu0 0
        %874 = vmatpush1.bf16.msra.mxu0 0
        %875 = vmatprep.subr.bf16.mxu0 0
        %876 = vmatpush1.bf16.msra.mxu0 0
        %877 = vmatprep.subr.bf16.mxu0 0
        %878 = vmatpush1.bf16.msra.mxu0 0
        %879 = vmatprep.subr.bf16.mxu0 0
        %880 = vmatpush1.bf16.msra.mxu0 0
        %881 = vmatprep.subr.bf16.mxu0 0
        %882 = vmatpush1.bf16.msra.mxu0 0
        %883 = vmatprep.subr.bf16.mxu0 0
        %884 = vmatpush1.bf16.msra.mxu0 0
        %885 = vmatprep.mubr.bf16.mxu0 0
        %886 = vmatmul.mubr.bf16.gmra.mrb[0].mxu0 %v851
        %v887 = vpop.f32.mrb[0].mxu0
        %v888 = vadd.f32 0.0, %v887
        %v889 = vpop.f32.mrb[0].mxu0
        %v890 = vpop.f32.mrb[0].mxu0
        %v891 = vpop.f32.mrb[0].mxu0
        %892 = vdwg.mxu0
        %v893 = vadd.f32 %v831, %v888
        %894 = vst.msk [vmem:[%s280] sm:$0xff] %vm323, %v893
        %s895 = sand.u32 %s153, 1
        %s896 = scalar_lea.sflag [#allocation4], %s895
        %s897 = sand.u32 %s153, 1
        %s898 = smul.addr %s897, 8
        %s899 = scalar_lea.vmem [#allocation8], %s898
        // Predicated region
        $region57: #{tpu_custom_call.1} parent=39 // pred_check
          %p900 = pneg %p163
        $region58: #{tpu_custom_call.1} parent=39 // pred_check_branch
          %902 = sbr.rel (%p900) target = $region60
        $region59: #{tpu_custom_call.1} parent=39 // pred_region
          %s904 = ssub.s32 128, 128
          %905 = vsyncadd %s896, %s904
          %s906 = smul.addr %s27, 128
          %s907 = scalar_lea.hbm %s5, %s906
          %s909 = sshll.u32 %s899, 4
          %s910 = int_to_ptr.vmem [resolvable:$true] %s909
          %912 = dma.vmem_to_hbm [thread:$0]  %s910, 128, %s907, %s896
        $region60: #{tpu_custom_call.1} parent=39 // pred_fallthru
          _
      $region40: #{tpu_custom_call.1} parent=5 // pred_fallthru
        _
      %p913 = scmp.le.s32.totalorder 2, %s18
      // Predicated region
      $region61: #{tpu_custom_call.1} parent=5 // pred_check
        %p914 = pneg %p913
      $region62: #{tpu_custom_call.1} parent=5 // pred_check_branch
        %916 = sbr.rel (%p914) target = $region64
      $region63: #{tpu_custom_call.1} parent=5 // pred_region
        %s917 = ssub.s32 %s18, 2
        // Predicated region
        $region65: #{tpu_custom_call.1} parent=63 // pred_check
          %p918 = pneg %p169
        $region66: #{tpu_custom_call.1} parent=63 // pred_check_branch
          %920 = sbr.rel (%p918) target = $region68
        $region67: #{tpu_custom_call.1} parent=63 // pred_region
          %s921 = sand.u32 %s154, 1
          %s922 = scalar_lea.sflag [#allocation4], %s921
          %s923 = sand.u32 %s154, 1
          %s924 = smul.addr %s923, 8
          %s925 = scalar_lea.vmem [#allocation8], %s924
          %926 = dma.done %s922, 128
        $region68: #{tpu_custom_call.1} parent=63 // pred_fallthru
          _
      $region64: #{tpu_custom_call.1} parent=5 // pred_fallthru
        _
    $region6: #{tpu_custom_call.1} parent=1 // loop_footer
      %s22 = sadd.s32 1, %s18
    $region7: #{tpu_custom_call.1} parent=1 // loop_footer_branch
      %17 = sbr.rel target = $region3
    $region8: #{tpu_custom_call.1} parent=1 // loop_exit
      _
    %927 = vsyncpa [#allocation3], 1
    %s928 = scalar_lea.sflag [#allocation3], 1
    %929 = vsyncpa %s928, 1
    %930 = vsyncpa [#allocation6], 1
    %931 = vsyncpa [#allocation4], 1
    %s932 = scalar_lea.sflag [#allocation4], 1
    %933 = vsyncpa %s932, 1

</llo_original>
